<compile_context>
chip_gen: v5e
topology: v5e:2x2
jax: 0.10.0
libtpu: 0.0.40
codegen_flags: <defaults>
</compile_context>

<pallas_src>
import jax
import jax.numpy as jnp
from jax import lax
from jax.experimental import pallas as pl
from jax.experimental.pallas import tpu as pltpu


def _fm_kernel(uid_ref, iid_ref, ue_t_ref, ie_t_ref, gb_ref, out_ref):
    """One batch tile of TB rows, batch laid out along the 128-lane axis.

    uid_ref, iid_ref : (1, TB)        int32 user / item indices for this tile (VMEM)
    ue_t_ref         : (D_aug, Nu_p)  f32 transposed augmented user table (VMEM, resident)
    ie_t_ref         : (D_aug, Ni_p)  f32 transposed augmented item table (VMEM, resident)
    gb_ref           : (1,)           f32 global bias (SMEM scalar)
    out_ref          : (1, TB)        f32 predictions (lane-dense)
    """
    uids = uid_ref[...]                      # (1, TB)
    iids = iid_ref[...]                      # (1, TB)
    tb = uids.shape[1]
    nu_p = ue_t_ref.shape[1]
    ni_p = ie_t_ref.shape[1]

    # One-hot gather on the MXU: (D_aug, N) @ (N, TB) -> (D_aug, TB).
    # Padded table rows are all-zero and never selected, so they contribute 0.
    u_oh = (lax.broadcasted_iota(jnp.int32, (nu_p, tb), 0) == uids).astype(jnp.float32)
    i_oh = (lax.broadcasted_iota(jnp.int32, (ni_p, tb), 0) == iids).astype(jnp.float32)
    u_vec = jnp.dot(ue_t_ref[...], u_oh, preferred_element_type=jnp.float32)
    i_vec = jnp.dot(ie_t_ref[...], i_oh, preferred_element_type=jnp.float32)

    # Augmented dot already contains user_bias + item_bias.
    dot = jnp.sum(u_vec * i_vec, axis=0, keepdims=True)      # (1, TB) lane-dense
    out_ref[...] = dot + gb_ref[0]


def hybrid_fm_forward(user, item, user_embed, item_embed,
                      user_bias, item_bias, global_bias, *, tile_b=128):
    """Pallas implementation of HybridFM.forward.

    user, item   : (B,) int indices
    user_embed   : (num_users, D) f32
    item_embed   : (num_items, D) f32
    user_bias    : (num_users, 1) f32
    item_bias    : (num_items, 1) f32
    global_bias  : (1,) f32
    returns      : (B,) f32
    """
    B = int(user.shape[0])
    nu, d = user_embed.shape
    ni = item_embed.shape[0]

    # ---- Fold biases into augmented, padded, transposed tables (cheap; in a
    # real model this would be precomputed once per weight update). ----------
    d_aug = d + 2
    d_aug_p = ((d_aug + 7) // 8) * 8          # sublane-aligned
    nu_p = ((nu + 127) // 128) * 128          # lane-aligned
    ni_p = ((ni + 127) // 128) * 128

    u_aug = jnp.zeros((nu_p, d_aug_p), jnp.float32)
    u_aug = u_aug.at[:nu, :d].set(user_embed.astype(jnp.float32))
    u_aug = u_aug.at[:nu, d].set(user_bias.reshape(nu).astype(jnp.float32))
    u_aug = u_aug.at[:nu, d + 1].set(1.0)

    i_aug = jnp.zeros((ni_p, d_aug_p), jnp.float32)
    i_aug = i_aug.at[:ni, :d].set(item_embed.astype(jnp.float32))
    i_aug = i_aug.at[:ni, d].set(1.0)
    i_aug = i_aug.at[:ni, d + 1].set(item_bias.reshape(ni).astype(jnp.float32))

    u_aug_t = u_aug.T                          # (D_aug_p, Nu_p)
    i_aug_t = i_aug.T                          # (D_aug_p, Ni_p)

    # ---- Pad the batch to a multiple of the tile and lay it out as (tiles, TB). ----
    num_tiles = pl.cdiv(B, tile_b)
    b_pad = num_tiles * tile_b
    uid = jnp.zeros((b_pad,), jnp.int32).at[:B].set(user.astype(jnp.int32))
    iid = jnp.zeros((b_pad,), jnp.int32).at[:B].set(item.astype(jnp.int32))
    uid = uid.reshape(num_tiles, tile_b)
    iid = iid.reshape(num_tiles, tile_b)

    gb = jnp.asarray(global_bias, jnp.float32).reshape(1)

    grid_spec = pltpu.PrefetchScalarGridSpec(
        num_scalar_prefetch=0,
        grid=(num_tiles,),
        in_specs=[
            pl.BlockSpec((1, tile_b), lambda t: (t, 0)),            # uid tile
            pl.BlockSpec((1, tile_b), lambda t: (t, 0)),            # iid tile
            pl.BlockSpec((d_aug_p, nu_p), lambda t: (0, 0)),        # user table (VMEM resident)
            pl.BlockSpec((d_aug_p, ni_p), lambda t: (0, 0)),        # item table (VMEM resident)
            pl.BlockSpec(memory_space=pltpu.MemorySpace.SMEM),      # global bias scalar
        ],
        out_specs=pl.BlockSpec((1, tile_b), lambda t: (t, 0)),      # lane-dense output
    )

    out = pl.pallas_call(
        _fm_kernel,
        out_shape=jax.ShapeDtypeStruct((num_tiles, tile_b), jnp.float32),
        grid_spec=grid_spec,
        compiler_params=pltpu.CompilerParams(
            dimension_semantics=("parallel",),   # batch tiles are independent
        ),
    )(uid, iid, u_aug_t, i_aug_t, gb)

    # torch: (...).squeeze() -> (B,)
    return out.reshape(b_pad)[:B]


def _reference_forward(user, item, user_embed, item_embed,
                       user_bias, item_bias, global_bias):
    uv = user_embed[user]
    iv = item_embed[item]
    dot = jnp.sum(uv * iv, axis=1)
    return dot + user_bias[user, 0] + item_bias[item, 0] + global_bias[0]


if __name__ == "__main__":
    # Small, deterministic synthetic setup (no checkpoint loading).
    num_users, num_items, D, B = 10, 12, 32, 8

    key = jax.random.PRNGKey(0)
    k_ue, k_ie, k_ub, k_ib, k_u, k_i = jax.random.split(key, 6)

    def bf16_exact(x):
        # Keep demo weights exactly bf16-representable so the correctness check
        # is independent of the MXU's f32 matmul precision mode (and matches
        # the review's suggestion of bf16-storable embeddings).
        return x.astype(jnp.bfloat16).astype(jnp.float32)

    user_embed = bf16_exact(jax.random.normal(k_ue, (num_users, D), dtype=jnp.float32))
    item_embed = bf16_exact(jax.random.normal(k_ie, (num_items, D), dtype=jnp.float32))
    user_bias = bf16_exact(jax.random.normal(k_ub, (num_users, 1), dtype=jnp.float32))
    item_bias = bf16_exact(jax.random.normal(k_ib, (num_items, 1), dtype=jnp.float32))
    # torch init is zeros; use a nonzero value so the global-bias path is exercised.
    global_bias = jnp.full((1,), 0.25, dtype=jnp.float32)

    user = jax.random.randint(k_u, (B,), 0, num_users, dtype=jnp.int32)
    item = jax.random.randint(k_i, (B,), 0, num_items, dtype=jnp.int32)

    pred = hybrid_fm_forward(user, item, user_embed, item_embed,
                             user_bias, item_bias, global_bias)
    pred = jax.block_until_ready(pred)

    ref = _reference_forward(user, item, user_embed, item_embed,
                             user_bias, item_bias, global_bias)
    assert pred.shape == (B,)
    assert jnp.allclose(pred, ref, atol=1e-4, rtol=1e-4), (pred, ref)

    print("KERNEL_OK")
</pallas_src>

<mosaic_0001>
module attributes {stable_mosaic.version = 11 : i64} {
  func.func @_fm_kernel(%arg0: i32, %arg1: memref<1x128xi32, #tpu.memory_space<vmem>>, %arg2: memref<1x128xi32, #tpu.memory_space<vmem>>, %arg3: memref<40x128xf32, #tpu.memory_space<vmem>>, %arg4: memref<40x128xf32, #tpu.memory_space<vmem>>, %arg5: memref<1xf32, #tpu.memory_space<smem>>, %arg6: memref<1x128xf32, #tpu.memory_space<vmem>>) attributes {dimension_semantics = [#tpu.dimension_semantics<parallel>], iteration_bounds = array<i64: 1>, scalar_prefetch = 0 : i64, scratch_operands = 0 : i64, tpu.core_type = #tpu.core_type<tc>, window_params = [{transform_indices = @transform_0, window_bounds = array<i64: 1, 128>}, {transform_indices = @transform_1, window_bounds = array<i64: 1, 128>}, {pipeline_mode = #tpu.pipeline_mode<synchronous>, transform_indices = @transform_2, window_bounds = array<i64: 40, 128>}, {pipeline_mode = #tpu.pipeline_mode<synchronous>, transform_indices = @transform_3, window_bounds = array<i64: 40, 128>}, {transform_indices = @transform_4, window_bounds = array<i64: 1>}, {transform_indices = @transform_5, window_bounds = array<i64: 1, 128>}]} {
    %c0 = arith.constant 0 : index
    %c0_0 = arith.constant 0 : index
    %0 = vector.load %arg1[%c0, %c0_0] : memref<1x128xi32, #tpu.memory_space<vmem>>, vector<1x128xi32>
    %c0_1 = arith.constant 0 : index
    %c0_2 = arith.constant 0 : index
    %1 = vector.load %arg2[%c0_1, %c0_2] : memref<1x128xi32, #tpu.memory_space<vmem>>, vector<1x128xi32>
    %2 = tpu.iota {dimensions = array<i32: 0>} : vector<128x128xi32>
    %3 = vector.broadcast %0 : vector<1x128xi32> to vector<128x128xi32>
    %4 = arith.cmpi eq, %2, %3 : vector<128x128xi32>
    %5 = arith.extui %4 : vector<128x128xi1> to vector<128x128xi32>
    %6 = arith.sitofp %5 : vector<128x128xi32> to vector<128x128xf32>
    %7 = tpu.iota {dimensions = array<i32: 0>} : vector<128x128xi32>
    %8 = vector.broadcast %1 : vector<1x128xi32> to vector<128x128xi32>
    %9 = arith.cmpi eq, %7, %8 : vector<128x128xi32>
    %10 = arith.extui %9 : vector<128x128xi1> to vector<128x128xi32>
    %11 = arith.sitofp %10 : vector<128x128xi32> to vector<128x128xf32>
    %c0_3 = arith.constant 0 : index
    %c0_4 = arith.constant 0 : index
    %12 = vector.load %arg3[%c0_3, %c0_4] : memref<40x128xf32, #tpu.memory_space<vmem>>, vector<40x128xf32>
    %cst = arith.constant dense<0.000000e+00> : vector<40x128xf32>
    %13 = tpu.matmul %12, %6, %cst {dimension_numbers = #tpu.dot_dimension_numbers<[1], [0], [0], [1], [0, 0, 1, 1], [], []>} : vector<40x128xf32>, vector<128x128xf32>, vector<40x128xf32> -> vector<40x128xf32>
    %c0_5 = arith.constant 0 : index
    %c0_6 = arith.constant 0 : index
    %14 = vector.load %arg4[%c0_5, %c0_6] : memref<40x128xf32, #tpu.memory_space<vmem>>, vector<40x128xf32>
    %cst_7 = arith.constant dense<0.000000e+00> : vector<40x128xf32>
    %15 = tpu.matmul %14, %11, %cst_7 {dimension_numbers = #tpu.dot_dimension_numbers<[1], [0], [0], [1], [0, 0, 1, 1], [], []>} : vector<40x128xf32>, vector<128x128xf32>, vector<40x128xf32> -> vector<40x128xf32>
    %16 = arith.mulf %13, %15 : vector<40x128xf32>
    %cst_8 = arith.constant dense<0.000000e+00> : vector<128xf32>
    %17 = vector.multi_reduction <add>, %16, %cst_8 [0] : vector<40x128xf32> to vector<128xf32>
    %18 = vector.shape_cast %17 : vector<128xf32> to vector<1x128xf32>
    %c0_9 = arith.constant 0 : index
    %19 = memref.load %arg5[%c0_9] : memref<1xf32, #tpu.memory_space<smem>>
    %20 = vector.broadcast %19 : f32 to vector<1x128xf32>
    %21 = arith.addf %18, %20 : vector<1x128xf32>
    %c0_10 = arith.constant 0 : index
    %c0_11 = arith.constant 0 : index
    %22 = vector.load %arg6[%c0_10, %c0_11] : memref<1x128xf32, #tpu.memory_space<vmem>>, vector<1x128xf32>
    tpu.vector_store %arg6[%c0_10, %c0_11], %21 {strides = array<i32>} : memref<1x128xf32, #tpu.memory_space<vmem>>, vector<1x128xf32>,
    return
  }
  func.func @transform_0(%arg0: i32) -> (i32, i32) {
    %c0_i32 = arith.constant 0 : i32
    %c0_i32_0 = arith.constant 0 : i32
    return %arg0, %c0_i32 : i32, i32
  }
  func.func @transform_1(%arg0: i32) -> (i32, i32) {
    %c0_i32 = arith.constant 0 : i32
    %c0_i32_0 = arith.constant 0 : i32
    return %arg0, %c0_i32 : i32, i32
  }
  func.func @transform_2(%arg0: i32) -> (i32, i32) {
    %c0_i32 = arith.constant 0 : i32
    %c0_i32_0 = arith.constant 0 : i32
    %c0_i32_1 = arith.constant 0 : i32
    return %c0_i32, %c0_i32_0 : i32, i32
  }
  func.func @transform_3(%arg0: i32) -> (i32, i32) {
    %c0_i32 = arith.constant 0 : i32
    %c0_i32_0 = arith.constant 0 : i32
    %c0_i32_1 = arith.constant 0 : i32
    return %c0_i32, %c0_i32_0 : i32, i32
  }
  func.func @transform_4(%arg0: i32) -> i32 {
    %c0_i32 = arith.constant 0 : i32
    %c0_i32_0 = arith.constant 0 : i32
    return %c0_i32 : i32
  }
  func.func @transform_5(%arg0: i32) -> (i32, i32) {
    %c0_i32 = arith.constant 0 : i32
    %c0_i32_0 = arith.constant 0 : i32
    return %arg0, %c0_i32 : i32, i32
  }
}

</mosaic_0001>

<llo_original>
// kernel: tpu_custom_call.1
$region0: #{tpu_custom_call.1}
  #allocation0 [shape = 'u32[]', space=smem, size = 0x4, offset = 0x4, fixed_abs, tag = 'smem constant byte address 0x4 - core index']
  #allocation1 [shape = 'u32[72,128]{1,0:T(1,128)}', space=vmem, size = 0x9000, scoped, tag = 'internal scratch']
  #allocation2 [shape = 'f32[1]{0:T(128)S(6)}', space=smem, size = 0x200, scoped, tag = 'scoped memory for tpu_custom_call.1']
  %s0 = inlined_call_operand.vmem [shape: s32[1,128], index: 0, kind: input, shape index: {}]
  %s1 = inlined_call_operand.vmem [shape: s32[1,128], index: 1, kind: input, shape index: {}]
  %s2 = inlined_call_operand.hbm [shape: f32[40,128], index: 2, kind: input, shape index: {}]
  %s3 = inlined_call_operand.hbm [shape: f32[40,128], index: 3, kind: input, shape index: {}]
  %s4 = inlined_call_operand.<no memory space> [shape: f32[1], index: 4, kind: input, shape index: {}]
  %s5 = inlined_call_operand.hbm [shape: f32[1,128], index: 5, kind: output, shape index: {}]
  %s6 = sld [smem:[#allocation0]]
  $region38: #{tpu_custom_call.1} parent=0
    _
  %s8 = ssub.s32 1, %s6
  %s9 = scalar_select 0, %s8, %s6
  %10 = sst [smem:[#allocation2]] %s4
  $region1: #{tpu_custom_call.1} parent=0
    #allocation3 [shape = 'u8[20480]{0}', space=vmem, size = 0x5000, scoped, tag = 'input window, operand 2, single buffered']
    #allocation4 [shape = 's32[1]{0}', space=sflag, size = 0x4, scoped, tag = 'scoped memory for tpu_custom_call.1']
    #allocation5 [shape = 's32[1]{0}', space=sflag, size = 0x4, scoped, tag = 'scoped memory for tpu_custom_call.1']
    #allocation6 [shape = 'u8[20480]{0}', space=vmem, size = 0x5000, scoped, tag = 'input window, operand 3, single buffered']
    #allocation7 [shape = 's32[1]{0}', space=sflag, size = 0x4, scoped, tag = 'scoped memory for tpu_custom_call.1']
    #allocation8 [shape = 'u8[512]{0}', space=vmem, size = 0x400, scoped, tag = 'output window, operand 0, single buffered']
    %11 = vsyncpa [#allocation4], 0
    %12 = vsyncpa [#allocation7], 0
    %13 = vsyncpa [#allocation5], 0
    // Predicated region
    $region2: #{tpu_custom_call.1} parent=1 // pred_check
      _
    $region3: #{tpu_custom_call.1} parent=1 // pred_check_branch
      %15 = sbr.rel (0) target = $region5
    $region4: #{tpu_custom_call.1} parent=1 // pred_region
      _
    $region5: #{tpu_custom_call.1} parent=1 // pred_fallthru
      _
    // Predicated region
    $region6: #{tpu_custom_call.1} parent=1 // pred_check
      _
    $region7: #{tpu_custom_call.1} parent=1 // pred_check_branch
      %17 = sbr.rel (0) target = $region9
    $region8: #{tpu_custom_call.1} parent=1 // pred_region
      _
    $region9: #{tpu_custom_call.1} parent=1 // pred_fallthru
      _
    // Predicated region
    $region10: #{tpu_custom_call.1} parent=1 // pred_check
      _
    $region11: #{tpu_custom_call.1} parent=1 // pred_check_branch
      %19 = sbr.rel (0) target = $region13
    $region12: #{tpu_custom_call.1} parent=1 // pred_region
      %21 = vsyncadd [#allocation4], 0
      %s22 = sshll.u32 %s2, 4
      %s23 = int_to_ptr.hbm [resolvable:$true] %s22
      %s24 = sshll.u32 [#allocation3], 4
      %s25 = int_to_ptr.vmem [resolvable:$true] %s24
      %30 = dma.hbm_to_vmem [thread:$0]  %s23, 640, %s25, [#allocation4], 128, 128, 8
    $region13: #{tpu_custom_call.1} parent=1 // pred_fallthru
      _
    // Predicated region
    $region14: #{tpu_custom_call.1} parent=1 // pred_check
      _
    $region15: #{tpu_custom_call.1} parent=1 // pred_check_branch
      %32 = sbr.rel (0) target = $region17
    $region16: #{tpu_custom_call.1} parent=1 // pred_region
      %34 = vsyncadd [#allocation7], 0
      %s35 = sshll.u32 %s3, 4
      %s36 = int_to_ptr.hbm [resolvable:$true] %s35
      %s37 = sshll.u32 [#allocation6], 4
      %s38 = int_to_ptr.vmem [resolvable:$true] %s37
      %43 = dma.hbm_to_vmem [thread:$0]  %s36, 640, %s38, [#allocation7], 128, 128, 8
    $region17: #{tpu_custom_call.1} parent=1 // pred_fallthru
      _
    // Predicated region
    $region18: #{tpu_custom_call.1} parent=1 // pred_check
      _
    $region19: #{tpu_custom_call.1} parent=1 // pred_check_branch
      %45 = sbr.rel (0) target = $region21
    $region20: #{tpu_custom_call.1} parent=1 // pred_region
      _
    $region21: #{tpu_custom_call.1} parent=1 // pred_fallthru
      _
    // Predicated region
    $region22: #{tpu_custom_call.1} parent=1 // pred_check
      _
    $region23: #{tpu_custom_call.1} parent=1 // pred_check_branch
      %47 = sbr.rel (0) target = $region25
    $region24: #{tpu_custom_call.1} parent=1 // pred_region
      %49 = dma.done [#allocation4], 640
    $region25: #{tpu_custom_call.1} parent=1 // pred_fallthru
      _
    // Predicated region
    $region26: #{tpu_custom_call.1} parent=1 // pred_check
      _
    $region27: #{tpu_custom_call.1} parent=1 // pred_check_branch
      %51 = sbr.rel (0) target = $region29
    $region28: #{tpu_custom_call.1} parent=1 // pred_region
      %53 = dma.done [#allocation7], 640
    $region29: #{tpu_custom_call.1} parent=1 // pred_fallthru
      _
    %v54 = vld [vmem:[%s0] sm:$0x1]
    %v55 = vld [vmem:[%s1] sm:$0x1]
    %v56 = vlaneseq
    %v57 = vshrl.u32 %v56, 7
    %v58 = vadd.s32 %v57, 8
    %v59 = vadd.s32 %v57, 16
    %v60 = vadd.s32 %v57, 24
    %v61 = vadd.s32 %v57, 32
    %v62 = vadd.s32 %v57, 40
    %v63 = vadd.s32 %v57, 48
    %v64 = vadd.s32 %v57, 56
    %v65 = vadd.s32 %v57, 64
    %v66 = vadd.s32 %v57, 72
    %v67 = vadd.s32 %v57, 80
    %v68 = vadd.s32 %v57, 88
    %v69 = vadd.s32 %v57, 96
    %v70 = vadd.s32 %v57, 104
    %v71 = vadd.s32 %v57, 112
    %v72 = vadd.s32 %v57, 120
    %v73 = vperm.slane %v54, 0
    %vm74 = vcmp.eq.s32.totalorder %v57, %v73
    %vm75 = vcmp.eq.s32.totalorder %v58, %v73
    %vm76 = vcmp.eq.s32.totalorder %v59, %v73
    %vm77 = vcmp.eq.s32.totalorder %v60, %v73
    %vm78 = vcmp.eq.s32.totalorder %v61, %v73
    %vm79 = vcmp.eq.s32.totalorder %v62, %v73
    %vm80 = vcmp.eq.s32.totalorder %v63, %v73
    %vm81 = vcmp.eq.s32.totalorder %v64, %v73
    %vm82 = vcmp.eq.s32.totalorder %v65, %v73
    %vm83 = vcmp.eq.s32.totalorder %v66, %v73
    %vm84 = vcmp.eq.s32.totalorder %v67, %v73
    %vm85 = vcmp.eq.s32.totalorder %v68, %v73
    %vm86 = vcmp.eq.s32.totalorder %v69, %v73
    %vm87 = vcmp.eq.s32.totalorder %v70, %v73
    %vm88 = vcmp.eq.s32.totalorder %v71, %v73
    %vm89 = vcmp.eq.s32.totalorder %v72, %v73
    %v90 = vsel %vm74, 1, 0
    %v91 = vsel %vm75, 1, 0
    %v92 = vsel %vm76, 1, 0
    %v93 = vsel %vm77, 1, 0
    %v94 = vsel %vm78, 1, 0
    %v95 = vsel %vm79, 1, 0
    %v96 = vsel %vm80, 1, 0
    %v97 = vsel %vm81, 1, 0
    %v98 = vsel %vm82, 1, 0
    %v99 = vsel %vm83, 1, 0
    %v100 = vsel %vm84, 1, 0
    %v101 = vsel %vm85, 1, 0
    %v102 = vsel %vm86, 1, 0
    %v103 = vsel %vm87, 1, 0
    %v104 = vsel %vm88, 1, 0
    %v105 = vsel %vm89, 1, 0
    %v106 = vcvt.s32.f32 %v90
    %v107 = vcvt.s32.f32 %v91
    %v108 = vcvt.s32.f32 %v92
    %v109 = vcvt.s32.f32 %v93
    %v110 = vcvt.s32.f32 %v94
    %v111 = vcvt.s32.f32 %v95
    %v112 = vcvt.s32.f32 %v96
    %v113 = vcvt.s32.f32 %v97
    %v114 = vcvt.s32.f32 %v98
    %v115 = vcvt.s32.f32 %v99
    %v116 = vcvt.s32.f32 %v100
    %v117 = vcvt.s32.f32 %v101
    %v118 = vcvt.s32.f32 %v102
    %v119 = vcvt.s32.f32 %v103
    %v120 = vcvt.s32.f32 %v104
    %v121 = vcvt.s32.f32 %v105
    %v122 = vperm.slane %v55, 0
    %vm123 = vcmp.eq.s32.totalorder %v57, %v122
    %vm124 = vcmp.eq.s32.totalorder %v58, %v122
    %vm125 = vcmp.eq.s32.totalorder %v59, %v122
    %vm126 = vcmp.eq.s32.totalorder %v60, %v122
    %vm127 = vcmp.eq.s32.totalorder %v61, %v122
    %vm128 = vcmp.eq.s32.totalorder %v62, %v122
    %vm129 = vcmp.eq.s32.totalorder %v63, %v122
    %vm130 = vcmp.eq.s32.totalorder %v64, %v122
    %vm131 = vcmp.eq.s32.totalorder %v65, %v122
    %vm132 = vcmp.eq.s32.totalorder %v66, %v122
    %vm133 = vcmp.eq.s32.totalorder %v67, %v122
    %vm134 = vcmp.eq.s32.totalorder %v68, %v122
    %vm135 = vcmp.eq.s32.totalorder %v69, %v122
    %vm136 = vcmp.eq.s32.totalorder %v70, %v122
    %vm137 = vcmp.eq.s32.totalorder %v71, %v122
    %vm138 = vcmp.eq.s32.totalorder %v72, %v122
    %v139 = vsel %vm123, 1, 0
    %v140 = vsel %vm124, 1, 0
    %v141 = vsel %vm125, 1, 0
    %v142 = vsel %vm126, 1, 0
    %v143 = vsel %vm127, 1, 0
    %v144 = vsel %vm128, 1, 0
    %v145 = vsel %vm129, 1, 0
    %v146 = vsel %vm130, 1, 0
    %v147 = vsel %vm131, 1, 0
    %v148 = vsel %vm132, 1, 0
    %v149 = vsel %vm133, 1, 0
    %v150 = vsel %vm134, 1, 0
    %v151 = vsel %vm135, 1, 0
    %v152 = vsel %vm136, 1, 0
    %v153 = vsel %vm137, 1, 0
    %v154 = vsel %vm138, 1, 0
    %v155 = vcvt.s32.f32 %v139
    %v156 = vcvt.s32.f32 %v140
    %v157 = vcvt.s32.f32 %v141
    %v158 = vcvt.s32.f32 %v142
    %v159 = vcvt.s32.f32 %v143
    %v160 = vcvt.s32.f32 %v144
    %v161 = vcvt.s32.f32 %v145
    %v162 = vcvt.s32.f32 %v146
    %v163 = vcvt.s32.f32 %v147
    %v164 = vcvt.s32.f32 %v148
    %v165 = vcvt.s32.f32 %v149
    %v166 = vcvt.s32.f32 %v150
    %v167 = vcvt.s32.f32 %v151
    %v168 = vcvt.s32.f32 %v152
    %v169 = vcvt.s32.f32 %v153
    %v170 = vcvt.s32.f32 %v154
    %v171 = vld [vmem:[#allocation3] sm:$0xff]
    %v172 = vld [vmem:[#allocation3 + $0x8] sm:$0xff]
    %v173 = vld [vmem:[#allocation3 + $0x10] sm:$0xff]
    %v174 = vld [vmem:[#allocation3 + $0x18] sm:$0xff]
    %v175 = vld [vmem:[#allocation3 + $0x20] sm:$0xff]
    %176 = vmatpush.msra.mxu0 %v121
    %177 = vmatpush.msra.mxu0 %v120
    %178 = vmatpush.msra.mxu0 %v119
    %179 = vmatpush.msra.mxu0 %v118
    %180 = vmatpush.msra.mxu0 %v117
    %181 = vmatpush.msra.mxu0 %v116
    %182 = vmatpush.msra.mxu0 %v115
    %183 = vmatpush.msra.mxu0 %v114
    %184 = vmatpush.msra.mxu0 %v113
    %185 = vmatpush.msra.mxu0 %v112
    %186 = vmatpush.msra.mxu0 %v111
    %187 = vmatpush.msra.mxu0 %v110
    %188 = vmatpush.msra.mxu0 %v109
    %189 = vmatpush.msra.mxu0 %v108
    %190 = vmatpush.msra.mxu0 %v107
    %191 = vmatpush.msra.mxu0 %v106
    %192 = vmatmul.f32.gmra.mxu0 %v171
    %v193 = vpop.f32.mrf.mxu0
    %v194 = vadd.f32 0.0, %v193
    %195 = vmatmul.f32.gmra.mxu0 %v172
    %v196 = vpop.f32.mrf.mxu0
    %v197 = vadd.f32 0.0, %v196
    %198 = vmatmul.f32.gmra.mxu0 %v173
    %v199 = vpop.f32.mrf.mxu0
    %v200 = vadd.f32 0.0, %v199
    %201 = vmatmul.f32.gmra.mxu0 %v174
    %v202 = vpop.f32.mrf.mxu0
    %v203 = vadd.f32 0.0, %v202
    %204 = vmatmul.f32.gmra.mxu0 %v175
    %v205 = vpop.f32.mrf.mxu0
    %v206 = vadd.f32 0.0, %v205
    %207 = vdwg.mxu0
    %v208 = vld [vmem:[#allocation6] sm:$0xff]
    %v209 = vld [vmem:[#allocation6 + $0x8] sm:$0xff]
    %v210 = vld [vmem:[#allocation6 + $0x10] sm:$0xff]
    %v211 = vld [vmem:[#allocation6 + $0x18] sm:$0xff]
    %v212 = vld [vmem:[#allocation6 + $0x20] sm:$0xff]
    %213 = vmatpush.msra.mxu0 %v170
    %214 = vmatpush.msra.mxu0 %v169
    %215 = vmatpush.msra.mxu0 %v168
    %216 = vmatpush.msra.mxu0 %v167
    %217 = vmatpush.msra.mxu0 %v166
    %218 = vmatpush.msra.mxu0 %v165
    %219 = vmatpush.msra.mxu0 %v164
    %220 = vmatpush.msra.mxu0 %v163
    %221 = vmatpush.msra.mxu0 %v162
    %222 = vmatpush.msra.mxu0 %v161
    %223 = vmatpush.msra.mxu0 %v160
    %224 = vmatpush.msra.mxu0 %v159
    %225 = vmatpush.msra.mxu0 %v158
    %226 = vmatpush.msra.mxu0 %v157
    %227 = vmatpush.msra.mxu0 %v156
    %228 = vmatpush.msra.mxu0 %v155
    %229 = vmatmul.f32.gmra.mxu0 %v208
    %v230 = vpop.f32.mrf.mxu0
    %v231 = vadd.f32 0.0, %v230
    %232 = vmatmul.f32.gmra.mxu0 %v209
    %v233 = vpop.f32.mrf.mxu0
    %v234 = vadd.f32 0.0, %v233
    %235 = vmatmul.f32.gmra.mxu0 %v210
    %v236 = vpop.f32.mrf.mxu0
    %v237 = vadd.f32 0.0, %v236
    %238 = vmatmul.f32.gmra.mxu0 %v211
    %v239 = vpop.f32.mrf.mxu0
    %v240 = vadd.f32 0.0, %v239
    %241 = vmatmul.f32.gmra.mxu0 %v212
    %v242 = vpop.f32.mrf.mxu0
    %v243 = vadd.f32 0.0, %v242
    %244 = vdwg.mxu0
    %v245 = vmul.f32 %v194, %v231
    %v246 = vmul.f32 %v197, %v234
    %v247 = vmul.f32 %v200, %v237
    %v248 = vmul.f32 %v203, %v240
    %v249 = vmul.f32 %v206, %v243
    %v250 = vadd.f32 %v245, %v246
    %v251 = vadd.f32 %v250, %v247
    %v252 = vadd.f32 %v251, %v248
    %v253 = vadd.f32 %v252, %v249
    %v254 = vrot.slane %v253, 4
    %v255 = vadd.f32 %v253, %v254
    %v256 = vrot.slane %v255, 2
    %v257 = vadd.f32 %v255, %v256
    %v258 = vrot.slane %v257, 1
    %v259 = vadd.f32 %v257, %v258
    %s260 = sld [smem:[#allocation2]]
    %v261 = vstv %s260
    %v262 = vadd.f32 %v259, %v261
    %263 = vst [vmem:[#allocation8] sm:$0x1] %v262
    // Predicated region
    $region30: #{tpu_custom_call.1} parent=1 // pred_check
      _
    $region31: #{tpu_custom_call.1} parent=1 // pred_check_branch
      %265 = sbr.rel (0) target = $region33
    $region32: #{tpu_custom_call.1} parent=1 // pred_region
      %267 = vsyncadd [#allocation5], 0
      %s269 = sshll.u32 [#allocation8], 4
      %s270 = int_to_ptr.vmem [resolvable:$true] %s269
      %s271 = sshll.u32 %s5, 4
      %s272 = int_to_ptr.hbm [resolvable:$true] %s271
      %274 = dma.vmem_to_hbm [thread:$0]  %s270, 16, %s272, [#allocation5]
    $region33: #{tpu_custom_call.1} parent=1 // pred_fallthru
      _
    // Predicated region
    $region34: #{tpu_custom_call.1} parent=1 // pred_check
      _
    $region35: #{tpu_custom_call.1} parent=1 // pred_check_branch
      %276 = sbr.rel (0) target = $region37
    $region36: #{tpu_custom_call.1} parent=1 // pred_region
      %278 = dma.done [#allocation5], 16
    $region37: #{tpu_custom_call.1} parent=1 // pred_fallthru
      _
    %279 = vsyncpa [#allocation4], 1
    %280 = vsyncpa [#allocation7], 1
    %281 = vsyncpa [#allocation5], 1

</llo_original>
